<compile_context>
chip_gen: v7x
topology: tpu7x:2x2x1
jax: 0.10.0
libtpu: 0.0.40
codegen_flags: <defaults>
</compile_context>

<pallas_src>
import functools

import jax
import jax.numpy as jnp
from jax.experimental import pallas as pl
from jax.experimental.pallas import tpu as pltpu

# dtype fed to the MXU (accumulation is f32 via preferred_element_type).
# Set to jnp.float32 to recover exact-f32 matmuls.
_MATMUL_DTYPE = jnp.bfloat16
_OUT_DTYPE = jnp.float32

_LANE = 128          # pad hidden / output feature dims to a multiple of this
_SUBLANE_F32 = 8
_SUBLANE_BF16 = 16   # bf16 packs 2 rows per sublane -> batch tile multiple of 16
_NEG_INF = -1e30


def _round_up(x, m):
    return ((x + m - 1) // m) * m


# ----------------------------- fused MLP kernel ----------------------------- #

def _make_fused_mlp_kernel(num_layers):
    """Kernel computing the whole MLP forward for one batch tile.

    Refs: (x_ref, w0, b0, w1, b1, ..., w_{L-1}, b_{L-1}, o_ref).
    Weights are bf16 and VMEM-resident (constant index_maps); biases are f32
    with the padded-logit softmax mask already folded into the last bias.
    Hidden feature dims are zero-padded to 128 lanes, so padded activation
    columns are exactly 0 and the math is exact.
    """

    def kernel(x_ref, *refs):
        o_ref = refs[-1]
        params = refs[:-1]
        h = x_ref[...]                                       # bf16 (tile, d_in)
        for l in range(num_layers):
            w = params[2 * l][...]                           # bf16, resident
            b = params[2 * l + 1][...]                       # f32 [1, D_out_pad]
            z = jnp.dot(h, w, preferred_element_type=jnp.float32) + b
            if l < num_layers - 1:
                # hidden layer: ReLU (f32), cast back to bf16 for the next MXU pass
                h = jnp.maximum(z, 0.0).astype(_MATMUL_DTYPE)
            else:
                # final layer: padded columns already at -1e30 via the bias,
                # softmax over dim=1 with an EXACT divide (runs once per tile).
                m = jnp.max(z, axis=1, keepdims=True)
                e = jnp.exp(z - m)
                denom = jnp.sum(e, axis=1, keepdims=True)
                o_ref[...] = (e / denom).astype(o_ref.dtype)

    return kernel


def _vmem_bytes_estimate(tile, dpads):
    """Rough VMEM need: double-buffered x/out blocks + resident params + temps."""
    bf16, f32 = 2, 4
    total = 2 * tile * dpads[0] * bf16                  # x blocks (double-buffered)
    total += 2 * tile * dpads[-1] * f32                 # out blocks (double-buffered)
    for l in range(len(dpads) - 1):
        total += 2 * dpads[l] * dpads[l + 1] * bf16     # weight blocks
        total += 2 * _SUBLANE_F32 * dpads[l + 1] * f32  # bias blocks
        total += tile * dpads[l + 1] * (f32 + bf16)     # z (f32) + h (bf16) temps
    return total


# ------------------------------ parameter prep ------------------------------ #

def pt_deep_init(key, arch):
    """Matches the module's explicit init: kaiming_uniform_(fan_in, relu) on the
    (in, out)-shaped weight (torch's fan_in = size(1) = arch[i+1]) + zero bias."""
    weights, biases = [], []
    for i in range(len(arch) - 1):
        key, sub = jax.random.split(key)
        fan_in = arch[i + 1]                      # torch: fan_in = tensor.size(1)
        bound = (6.0 / fan_in) ** 0.5             # gain=sqrt(2), bound=sqrt(3)*std
        w = jax.random.uniform(sub, (arch[i], arch[i + 1]), dtype=jnp.float32,
                               minval=-bound, maxval=bound)
        b = jnp.zeros((arch[i + 1],), dtype=jnp.float32)
        weights.append(w)
        biases.append(b)
    return weights, biases


def pt_deep_prepare_params(weights, biases):
    """Pad feature dims to 128 lanes and cast weights to bf16 -- ONCE.

    Call once per parameter set and reuse across forward calls so the per-call
    HBM traffic is only x and the output.  Layer-0's K dim stays unpadded so x
    never needs lane padding; the padded-logit softmax mask is folded into the
    final bias.  Returns (padded_weights, padded_biases, dims).
    """
    num_layers = len(weights)
    dims = tuple([int(weights[0].shape[0])] + [int(w.shape[1]) for w in weights])
    dpads = (dims[0],) + tuple(_round_up(d, _LANE) for d in dims[1:])

    pweights, pbiases = [], []
    for l in range(num_layers):
        wp = jnp.pad(weights[l].astype(_MATMUL_DTYPE),
                     ((0, dpads[l] - dims[l]), (0, dpads[l + 1] - dims[l + 1])))
        pad_val = _NEG_INF if l == num_layers - 1 else 0.0   # fold softmax mask
        bp = jnp.pad(biases[l].astype(jnp.float32),
                     (0, dpads[l + 1] - dims[l + 1]), constant_values=pad_val)
        pweights.append(wp)
        pbiases.append(bp.reshape(1, dpads[l + 1]))
    return tuple(pweights), tuple(pbiases), dims


# ------------------------------ PTDeep forward ------------------------------ #

@functools.partial(jax.jit, static_argnames=("dims", "tile_n"))
def pt_deep_forward(x, pweights, pbiases, *, dims, tile_n=512):
    n, d_in = x.shape
    num_layers = len(pweights)
    dpads = (int(pweights[0].shape[0]),) + tuple(int(w.shape[1]) for w in pweights)
    assert d_in == dims[0] == dpads[0]

    # Generation-aware VMEM budget (v5e/v6e: 128 MiB physical, v7x: 64 MiB);
    # leave ~25% headroom for compiler scratch / semaphores / alignment.
    try:
        vmem_cap = int(getattr(pltpu.get_tpu_info(), "vmem_capacity_bytes", 64 << 20))
    except Exception:                                   # non-TPU host / interpret
        vmem_cap = 64 << 20
    vmem_budget = (vmem_cap * 3) // 4

    # Batch tile: multiple of 16 (bf16 rows), as large as the budget allows.
    tile = min(_round_up(tile_n, _SUBLANE_BF16), _round_up(n, _SUBLANE_BF16))
    while tile > _SUBLANE_BF16 and _vmem_bytes_estimate(tile, dpads) > vmem_budget:
        tile = _round_up(max(tile // 2, _SUBLANE_BF16), _SUBLANE_BF16)
    if _vmem_bytes_estimate(_SUBLANE_BF16, dpads) > vmem_budget:
        # TODO(synk): tile the K/N axes of oversized layers (pltpu.emit_pipeline
        # over the weight) instead of requiring all parameters to be VMEM-resident;
        # needed for very wide layers on v7x's 64 MiB VMEM.
        raise ValueError("PTDeep parameters too large to keep VMEM-resident for "
                         "this architecture; weight tiling is not implemented.")
    n_pad = _round_up(n, tile)

    # Row-pad + cast x (no lane padding: the block keeps the true d_in).
    x_p = x.astype(_MATMUL_DTYPE)
    if n_pad != n:
        x_p = jnp.pad(x_p, ((0, n_pad - n), (0, 0)))

    args = [x_p]
    in_specs = [pl.BlockSpec((tile, d_in), lambda i: (i, 0))]
    for l in range(num_layers):
        args += [pweights[l], pbiases[l]]
        # Constant index_maps -> param blocks stay resident in VMEM across the
        # batch grid (no re-fetch, no per-tile casts).
        in_specs += [
            pl.BlockSpec((dpads[l], dpads[l + 1]), lambda i: (0, 0)),
            pl.BlockSpec((1, dpads[l + 1]), lambda i: (0, 0)),
        ]

    vmem_limit = int(min(max(_vmem_bytes_estimate(tile, dpads) + (8 << 20),
                             32 << 20), vmem_budget))

    out_padded = pl.pallas_call(
        _make_fused_mlp_kernel(num_layers),
        out_shape=jax.ShapeDtypeStruct((n_pad, dpads[-1]), _OUT_DTYPE),
        grid=(n_pad // tile,),
        in_specs=in_specs,
        out_specs=pl.BlockSpec((tile, dpads[-1]), lambda i: (i, 0)),
        compiler_params=pltpu.CompilerParams(
            dimension_semantics=("parallel",),   # batch tiles shard across TCs (v7x)
            vmem_limit_bytes=vmem_limit,
        ),
    )(*args)

    return out_padded[:n, :dims[-1]].astype(jnp.float32)


# --------------------------------- driver ---------------------------------- #

if __name__ == "__main__":
    key = jax.random.PRNGKey(0)
    key, xkey, pkey = jax.random.split(key, 3)

    # Small MLP architecture: 16 -> 32 -> 32 -> 10, batch of 8.
    arch = [16, 32, 32, 10]
    n = 8

    x = jax.random.normal(xkey, (n, arch[0]), dtype=jnp.float32)
    weights, biases = pt_deep_init(pkey, arch)

    # Pad/cast parameters ONCE; reuse across forward calls.
    pweights, pbiases, dims = pt_deep_prepare_params(weights, biases)

    probs = pt_deep_forward(x, pweights, pbiases, dims=dims)
    probs = jax.block_until_ready(probs)

    # Sanity: shape and exact-divide softmax rows sum to 1.
    assert probs.shape == (n, arch[-1])
    assert bool(jnp.allclose(jnp.sum(probs, axis=1), 1.0, atol=1e-4))

    # Pure-JAX reference mirroring the kernel numerics (bf16 MXU inputs,
    # f32 accumulation, f32 bias/ReLU/softmax).
    h = x.astype(_MATMUL_DTYPE)
    for i in range(len(weights) - 1):
        z = jnp.dot(h, weights[i].astype(_MATMUL_DTYPE),
                    preferred_element_type=jnp.float32) + biases[i]
        h = jnp.maximum(z, 0.0).astype(_MATMUL_DTYPE)
    logits = jnp.dot(h, weights[-1].astype(_MATMUL_DTYPE),
                     preferred_element_type=jnp.float32) + biases[-1]
    ref = jax.nn.softmax(logits, axis=1)
    assert bool(jnp.allclose(probs, ref, atol=2e-3, rtol=2e-3))

    print("KERNEL_OK")
</pallas_src>

<mosaic_0001>
module attributes {stable_mosaic.version = 11 : i64} {
  func.func @kernel(%arg0: i32, %arg1: memref<16x16xbf16, #tpu.memory_space<vmem>>, %arg2: memref<16x128xbf16, #tpu.memory_space<vmem>>, %arg3: memref<1x128xf32, #tpu.memory_space<vmem>>, %arg4: memref<128x128xbf16, #tpu.memory_space<vmem>>, %arg5: memref<1x128xf32, #tpu.memory_space<vmem>>, %arg6: memref<128x128xbf16, #tpu.memory_space<vmem>>, %arg7: memref<1x128xf32, #tpu.memory_space<vmem>>, %arg8: memref<16x128xf32, #tpu.memory_space<vmem>>) attributes {dimension_semantics = [#tpu.dimension_semantics<parallel>], iteration_bounds = array<i64: 1>, scalar_prefetch = 0 : i64, scratch_operands = 0 : i64, tpu.core_type = #tpu.core_type<tc>, window_params = [{transform_indices = @transform_0, window_bounds = array<i64: 16, 16>}, {pipeline_mode = #tpu.pipeline_mode<synchronous>, transform_indices = @transform_1, window_bounds = array<i64: 16, 128>}, {pipeline_mode = #tpu.pipeline_mode<synchronous>, transform_indices = @transform_2, window_bounds = array<i64: 1, 128>}, {pipeline_mode = #tpu.pipeline_mode<synchronous>, transform_indices = @transform_3, window_bounds = array<i64: 128, 128>}, {pipeline_mode = #tpu.pipeline_mode<synchronous>, transform_indices = @transform_4, window_bounds = array<i64: 1, 128>}, {pipeline_mode = #tpu.pipeline_mode<synchronous>, transform_indices = @transform_5, window_bounds = array<i64: 128, 128>}, {pipeline_mode = #tpu.pipeline_mode<synchronous>, transform_indices = @transform_6, window_bounds = array<i64: 1, 128>}, {transform_indices = @transform_7, window_bounds = array<i64: 16, 128>}]} {
    %c0 = arith.constant 0 : index
    %c0_0 = arith.constant 0 : index
    %0 = vector.load %arg1[%c0, %c0_0] : memref<16x16xbf16, #tpu.memory_space<vmem>>, vector<16x16xbf16>
    %c0_1 = arith.constant 0 : index
    %c0_2 = arith.constant 0 : index
    %1 = vector.load %arg2[%c0_1, %c0_2] : memref<16x128xbf16, #tpu.memory_space<vmem>>, vector<16x128xbf16>
    %c0_3 = arith.constant 0 : index
    %c0_4 = arith.constant 0 : index
    %2 = vector.load %arg3[%c0_3, %c0_4] : memref<1x128xf32, #tpu.memory_space<vmem>>, vector<1x128xf32>
    %cst = arith.constant dense<0.000000e+00> : vector<16x128xf32>
    %3 = tpu.matmul %0, %1, %cst {dimension_numbers = #tpu.dot_dimension_numbers<[1], [0], [0], [1], [0, 0, 1, 1], [], []>} : vector<16x16xbf16>, vector<16x128xbf16>, vector<16x128xf32> -> vector<16x128xf32>
    %4 = vector.broadcast %2 : vector<1x128xf32> to vector<16x128xf32>
    %5 = arith.addf %3, %4 : vector<16x128xf32>
    %cst_5 = arith.constant 0.000000e+00 : f32
    %6 = vector.broadcast %cst_5 : f32 to vector<16x128xf32>
    %7 = arith.maximumf %5, %6 : vector<16x128xf32>
    %8 = arith.truncf %7 : vector<16x128xf32> to vector<16x128xbf16>
    %c0_6 = arith.constant 0 : index
    %c0_7 = arith.constant 0 : index
    %9 = vector.load %arg4[%c0_6, %c0_7] : memref<128x128xbf16, #tpu.memory_space<vmem>>, vector<128x128xbf16>
    %c0_8 = arith.constant 0 : index
    %c0_9 = arith.constant 0 : index
    %10 = vector.load %arg5[%c0_8, %c0_9] : memref<1x128xf32, #tpu.memory_space<vmem>>, vector<1x128xf32>
    %cst_10 = arith.constant dense<0.000000e+00> : vector<16x128xf32>
    %11 = tpu.matmul %8, %9, %cst_10 {dimension_numbers = #tpu.dot_dimension_numbers<[1], [0], [0], [1], [0, 0, 1, 1], [], []>} : vector<16x128xbf16>, vector<128x128xbf16>, vector<16x128xf32> -> vector<16x128xf32>
    %12 = vector.broadcast %10 : vector<1x128xf32> to vector<16x128xf32>
    %13 = arith.addf %11, %12 : vector<16x128xf32>
    %cst_11 = arith.constant 0.000000e+00 : f32
    %14 = vector.broadcast %cst_11 : f32 to vector<16x128xf32>
    %15 = arith.maximumf %13, %14 : vector<16x128xf32>
    %16 = arith.truncf %15 : vector<16x128xf32> to vector<16x128xbf16>
    %c0_12 = arith.constant 0 : index
    %c0_13 = arith.constant 0 : index
    %17 = vector.load %arg6[%c0_12, %c0_13] : memref<128x128xbf16, #tpu.memory_space<vmem>>, vector<128x128xbf16>
    %c0_14 = arith.constant 0 : index
    %c0_15 = arith.constant 0 : index
    %18 = vector.load %arg7[%c0_14, %c0_15] : memref<1x128xf32, #tpu.memory_space<vmem>>, vector<1x128xf32>
    %cst_16 = arith.constant dense<0.000000e+00> : vector<16x128xf32>
    %19 = tpu.matmul %16, %17, %cst_16 {dimension_numbers = #tpu.dot_dimension_numbers<[1], [0], [0], [1], [0, 0, 1, 1], [], []>} : vector<16x128xbf16>, vector<128x128xbf16>, vector<16x128xf32> -> vector<16x128xf32>
    %20 = vector.broadcast %18 : vector<1x128xf32> to vector<16x128xf32>
    %21 = arith.addf %19, %20 : vector<16x128xf32>
    %cst_17 = arith.constant dense<0xFF800000> : vector<16xf32>
    %22 = vector.multi_reduction <maximumf>, %21, %cst_17 [1] : vector<16x128xf32> to vector<16xf32>
    %23 = vector.shape_cast %22 : vector<16xf32> to vector<16x1xf32>
    %24 = vector.broadcast %23 : vector<16x1xf32> to vector<16x128xf32>
    %25 = arith.subf %21, %24 : vector<16x128xf32>
    %26 = math.exp %25 : vector<16x128xf32>
    %cst_18 = arith.constant dense<0.000000e+00> : vector<16xf32>
    %27 = vector.multi_reduction <add>, %26, %cst_18 [1] : vector<16x128xf32> to vector<16xf32>
    %28 = vector.shape_cast %27 : vector<16xf32> to vector<16x1xf32>
    %29 = vector.broadcast %28 : vector<16x1xf32> to vector<16x128xf32>
    %30 = arith.divf %26, %29 : vector<16x128xf32>
    %c0_19 = arith.constant 0 : index
    %c0_20 = arith.constant 0 : index
    %31 = vector.load %arg8[%c0_19, %c0_20] : memref<16x128xf32, #tpu.memory_space<vmem>>, vector<16x128xf32>
    tpu.vector_store %arg8[%c0_19, %c0_20], %30 {strides = array<i32>} : memref<16x128xf32, #tpu.memory_space<vmem>>, vector<16x128xf32>,
    return
  }
  func.func @transform_0(%arg0: i32) -> (i32, i32) {
    %c0_i32 = arith.constant 0 : i32
    %c0_i32_0 = arith.constant 0 : i32
    return %arg0, %c0_i32 : i32, i32
  }
  func.func @transform_1(%arg0: i32) -> (i32, i32) {
    %c0_i32 = arith.constant 0 : i32
    %c0_i32_0 = arith.constant 0 : i32
    %c0_i32_1 = arith.constant 0 : i32
    return %c0_i32, %c0_i32_0 : i32, i32
  }
  func.func @transform_2(%arg0: i32) -> (i32, i32) {
    %c0_i32 = arith.constant 0 : i32
    %c0_i32_0 = arith.constant 0 : i32
    %c0_i32_1 = arith.constant 0 : i32
    return %c0_i32, %c0_i32_0 : i32, i32
  }
  func.func @transform_3(%arg0: i32) -> (i32, i32) {
    %c0_i32 = arith.constant 0 : i32
    %c0_i32_0 = arith.constant 0 : i32
    %c0_i32_1 = arith.constant 0 : i32
    return %c0_i32, %c0_i32_0 : i32, i32
  }
  func.func @transform_4(%arg0: i32) -> (i32, i32) {
    %c0_i32 = arith.constant 0 : i32
    %c0_i32_0 = arith.constant 0 : i32
    %c0_i32_1 = arith.constant 0 : i32
    return %c0_i32, %c0_i32_0 : i32, i32
  }
  func.func @transform_5(%arg0: i32) -> (i32, i32) {
    %c0_i32 = arith.constant 0 : i32
    %c0_i32_0 = arith.constant 0 : i32
    %c0_i32_1 = arith.constant 0 : i32
    return %c0_i32, %c0_i32_0 : i32, i32
  }
  func.func @transform_6(%arg0: i32) -> (i32, i32) {
    %c0_i32 = arith.constant 0 : i32
    %c0_i32_0 = arith.constant 0 : i32
    %c0_i32_1 = arith.constant 0 : i32
    return %c0_i32, %c0_i32_0 : i32, i32
  }
  func.func @transform_7(%arg0: i32) -> (i32, i32) {
    %c0_i32 = arith.constant 0 : i32
    %c0_i32_0 = arith.constant 0 : i32
    return %arg0, %c0_i32 : i32, i32
  }
}

</mosaic_0001>

<llo_original>
// kernel: pt_deep_forward.1
$region0: #{pt_deep_forward.1}
  #allocation0 [shape = 'u32[]', space=smem, size = 0x4, offset = 0x4, fixed_abs, tag = 'smem constant byte address 0x4 - core index']
  #allocation1 [shape = 'u32[144,128]{1,0:T(1,128)}', space=vmem, size = 0x12000, scoped, tag = 'internal scratch']
  %s0 = inlined_call_operand.vmem [shape: bf16[16,16], index: 0, kind: input, shape index: {}]
  %s1 = inlined_call_operand.vmem [shape: bf16[16,128], index: 1, kind: input, shape index: {}]
  %s2 = inlined_call_operand.vmem [shape: f32[1,128], index: 2, kind: input, shape index: {}]
  %s3 = inlined_call_operand.hbm [shape: bf16[128,128], index: 3, kind: input, shape index: {}]
  %s4 = inlined_call_operand.vmem [shape: f32[1,128], index: 4, kind: input, shape index: {}]
  %s5 = inlined_call_operand.hbm [shape: bf16[128,128], index: 5, kind: input, shape index: {}]
  %s6 = inlined_call_operand.vmem [shape: f32[1,128], index: 6, kind: input, shape index: {}]
  %s7 = inlined_call_operand.vmem [shape: f32[16,128], index: 7, kind: output, shape index: {}]
  %s8 = sld [smem:[#allocation0]]
  $region46: #{pt_deep_forward.1} parent=0
    _
  %s10 = ssub.s32 1, %s8
  %s11 = scalar_select 0, %s10, %s8
  $region1: #{pt_deep_forward.1} parent=0
    #allocation2 [shape = 'u8[32768]{0}', space=vmem, size = 0x8000, scoped, tag = 'input window, operand 3, single buffered']
    #allocation3 [shape = 's32[1]{0}', space=sflag, size = 0x4, scoped, tag = 'scoped memory for pt_deep_forward.1']
    #allocation4 [shape = 'u8[32768]{0}', space=vmem, size = 0x8000, scoped, tag = 'input window, operand 5, single buffered']
    #allocation5 [shape = 's32[1]{0}', space=sflag, size = 0x4, scoped, tag = 'scoped memory for pt_deep_forward.1']
    %12 = vsyncpa [#allocation3], 0
    %13 = vsyncpa [#allocation5], 0
    // Predicated region
    $region2: #{pt_deep_forward.1} parent=1 // pred_check
      _
    $region3: #{pt_deep_forward.1} parent=1 // pred_check_branch
      %15 = sbr.rel (0) target = $region5
    $region4: #{pt_deep_forward.1} parent=1 // pred_region
      _
    $region5: #{pt_deep_forward.1} parent=1 // pred_fallthru
      _
    // Predicated region
    $region6: #{pt_deep_forward.1} parent=1 // pred_check
      _
    $region7: #{pt_deep_forward.1} parent=1 // pred_check_branch
      %17 = sbr.rel (0) target = $region9
    $region8: #{pt_deep_forward.1} parent=1 // pred_region
      _
    $region9: #{pt_deep_forward.1} parent=1 // pred_fallthru
      _
    // Predicated region
    $region10: #{pt_deep_forward.1} parent=1 // pred_check
      _
    $region11: #{pt_deep_forward.1} parent=1 // pred_check_branch
      %19 = sbr.rel (0) target = $region13
    $region12: #{pt_deep_forward.1} parent=1 // pred_region
      _
    $region13: #{pt_deep_forward.1} parent=1 // pred_fallthru
      _
    // Predicated region
    $region14: #{pt_deep_forward.1} parent=1 // pred_check
      _
    $region15: #{pt_deep_forward.1} parent=1 // pred_check_branch
      %21 = sbr.rel (0) target = $region17
    $region16: #{pt_deep_forward.1} parent=1 // pred_region
      %s23 = ssub.s32 1024, 1024
      %24 = vsyncadd [#allocation3], %s23
      %s25 = sshll.u32 [#allocation2], 4
      %s26 = int_to_ptr.vmem [resolvable:$true] %s25
      %31 = dma.hbm_to_vmem [thread:$0]  %s3, 1024, %s26, [#allocation3], 64, 64, 4
    $region17: #{pt_deep_forward.1} parent=1 // pred_fallthru
      _
    // Predicated region
    $region18: #{pt_deep_forward.1} parent=1 // pred_check
      _
    $region19: #{pt_deep_forward.1} parent=1 // pred_check_branch
      %33 = sbr.rel (0) target = $region21
    $region20: #{pt_deep_forward.1} parent=1 // pred_region
      _
    $region21: #{pt_deep_forward.1} parent=1 // pred_fallthru
      _
    // Predicated region
    $region22: #{pt_deep_forward.1} parent=1 // pred_check
      _
    $region23: #{pt_deep_forward.1} parent=1 // pred_check_branch
      %35 = sbr.rel (0) target = $region25
    $region24: #{pt_deep_forward.1} parent=1 // pred_region
      %s37 = ssub.s32 1024, 1024
      %38 = vsyncadd [#allocation5], %s37
      %s39 = sshll.u32 [#allocation4], 4
      %s40 = int_to_ptr.vmem [resolvable:$true] %s39
      %45 = dma.hbm_to_vmem [thread:$0]  %s5, 1024, %s40, [#allocation5], 64, 64, 4
    $region25: #{pt_deep_forward.1} parent=1 // pred_fallthru
      _
    // Predicated region
    $region26: #{pt_deep_forward.1} parent=1 // pred_check
      _
    $region27: #{pt_deep_forward.1} parent=1 // pred_check_branch
      %47 = sbr.rel (0) target = $region29
    $region28: #{pt_deep_forward.1} parent=1 // pred_region
      _
    $region29: #{pt_deep_forward.1} parent=1 // pred_fallthru
      _
    // Predicated region
    $region30: #{pt_deep_forward.1} parent=1 // pred_check
      _
    $region31: #{pt_deep_forward.1} parent=1 // pred_check_branch
      %49 = sbr.rel (0) target = $region33
    $region32: #{pt_deep_forward.1} parent=1 // pred_region
      %50 = dma.done [#allocation3], 1024
    $region33: #{pt_deep_forward.1} parent=1 // pred_fallthru
      _
    // Predicated region
    $region34: #{pt_deep_forward.1} parent=1 // pred_check
      _
    $region35: #{pt_deep_forward.1} parent=1 // pred_check_branch
      %52 = sbr.rel (0) target = $region37
    $region36: #{pt_deep_forward.1} parent=1 // pred_region
      %53 = dma.done [#allocation5], 1024
    $region37: #{pt_deep_forward.1} parent=1 // pred_fallthru
      _
    %v55 = vld [vmem:[%s0] sm:$0xf]
    %v56 = vld [vmem:[%s0 + $0x4] sm:$0xf]
    %v57 = vld [vmem:[%s1] sm:$0xf]
    %v58 = vld [vmem:[%s1 + $0x4] sm:$0xf]
    %v59 = vld [vmem:[%s2] sm:$0x1]
    %v61 = vlaneseq
    %v62 = vshrl.u32 %v61, 7
    %v63 = vsub.s32 0, %v62
    %v64 = vrot.slane %v59, %v63
    %v68 = vunpack.c.l.b16 %v55
    %v69 = vunpack.c.l.b16 %v56
    %v70 = vpack.c.b16 %v69, %v68
    %v73 = vunpack.c.l.b16 %v57
    %v74 = vunpack.c.l.b16 %v58
    %v75 = vpack.c.b16 %v74, %v73
    %vm77 = vcmask 130048
    %v79 = vsel %vm77, %v70, 0
    %81 = vmatprep.subr.bf16.mxu0 0
    %82 = vmatpush1.bf16.msra.mxu0 %v75
    %83 = vmatprep.subr.bf16.mxu0 0
    %84 = vmatpush1.bf16.msra.mxu0 0
    %85 = vmatprep.subr.bf16.mxu0 0
    %86 = vmatpush1.bf16.msra.mxu0 0
    %87 = vmatprep.subr.bf16.mxu0 0
    %88 = vmatpush1.bf16.msra.mxu0 0
    %89 = vmatprep.subr.bf16.mxu0 0
    %90 = vmatpush1.bf16.msra.mxu0 0
    %91 = vmatprep.subr.bf16.mxu0 0
    %92 = vmatpush1.bf16.msra.mxu0 0
    %93 = vmatprep.subr.bf16.mxu0 0
    %94 = vmatpush1.bf16.msra.mxu0 0
    %95 = vmatprep.subr.bf16.mxu0 0
    %96 = vmatpush1.bf16.msra.mxu0 0
    %97 = vmatprep.subr.bf16.mxu0 0
    %98 = vmatpush1.bf16.msra.mxu0 0
    %99 = vmatprep.subr.bf16.mxu0 0
    %100 = vmatpush1.bf16.msra.mxu0 0
    %101 = vmatprep.subr.bf16.mxu0 0
    %102 = vmatpush1.bf16.msra.mxu0 0
    %103 = vmatprep.subr.bf16.mxu0 0
    %104 = vmatpush1.bf16.msra.mxu0 0
    %105 = vmatprep.subr.bf16.mxu0 0
    %106 = vmatpush1.bf16.msra.mxu0 0
    %107 = vmatprep.subr.bf16.mxu0 0
    %108 = vmatpush1.bf16.msra.mxu0 0
    %109 = vmatprep.subr.bf16.mxu0 0
    %110 = vmatpush1.bf16.msra.mxu0 0
    %111 = vmatprep.subr.bf16.mxu0 0
    %112 = vmatpush1.bf16.msra.mxu0 0
    %113 = vmatprep.mubr.bf16.mxu0 0
    %114 = vmatmul.mubr.bf16.gmra.mrb[0].mxu0 %v79
    %v115 = vpop.f32.mrb[0].mxu0
    %v116 = vadd.f32 %v64, %v115
    %v117 = vpop.f32.mrb[0].mxu0
    %v118 = vpop.f32.mrb[0].mxu0
    %v119 = vadd.f32 %v64, %v118
    %v120 = vpop.f32.mrb[0].mxu0
    %121 = vdwg.mxu0
    %v122 = vmax.f32 %v116, 0.0
    %v123 = vmax.f32 %v119, 0.0
    %v124 = vpack.c.bf16 %v123, %v122
    %v125 = vld [vmem:[#allocation2] sm:$0xf]
    %v126 = vld [vmem:[#allocation2 + $0x4] sm:$0xf]
    %v127 = vld [vmem:[#allocation2 + $0x8] sm:$0xf]
    %v128 = vld [vmem:[#allocation2 + $0xc] sm:$0xf]
    %v129 = vld [vmem:[#allocation2 + $0x10] sm:$0xf]
    %v130 = vld [vmem:[#allocation2 + $0x14] sm:$0xf]
    %v131 = vld [vmem:[#allocation2 + $0x18] sm:$0xf]
    %v132 = vld [vmem:[#allocation2 + $0x1c] sm:$0xf]
    %v133 = vld [vmem:[#allocation2 + $0x20] sm:$0xf]
    %v134 = vld [vmem:[#allocation2 + $0x24] sm:$0xf]
    %v135 = vld [vmem:[#allocation2 + $0x28] sm:$0xf]
    %v136 = vld [vmem:[#allocation2 + $0x2c] sm:$0xf]
    %v137 = vld [vmem:[#allocation2 + $0x30] sm:$0xf]
    %v138 = vld [vmem:[#allocation2 + $0x34] sm:$0xf]
    %v139 = vld [vmem:[#allocation2 + $0x38] sm:$0xf]
    %v140 = vld [vmem:[#allocation2 + $0x3c] sm:$0xf]
    %v141 = vld [vmem:[%s4] sm:$0x1]
    %v143 = vlaneseq
    %v144 = vshrl.u32 %v143, 7
    %v145 = vsub.s32 0, %v144
    %v146 = vrot.slane %v141, %v145
    %v164 = vunpack.c.l.b16 %v125
    %v165 = vunpack.c.l.b16 %v126
    %v166 = vunpack.c.l.b16 %v127
    %v167 = vunpack.c.l.b16 %v128
    %v168 = vunpack.c.l.b16 %v129
    %v169 = vunpack.c.l.b16 %v130
    %v170 = vunpack.c.l.b16 %v131
    %v171 = vunpack.c.l.b16 %v132
    %v172 = vunpack.c.l.b16 %v133
    %v173 = vunpack.c.l.b16 %v134
    %v174 = vunpack.c.l.b16 %v135
    %v175 = vunpack.c.l.b16 %v136
    %v176 = vunpack.c.l.b16 %v137
    %v177 = vunpack.c.l.b16 %v138
    %v178 = vunpack.c.l.b16 %v139
    %v179 = vunpack.c.l.b16 %v140
    %v180 = vpack.c.b16 %v165, %v164
    %v181 = vpack.c.b16 %v167, %v166
    %v182 = vpack.c.b16 %v169, %v168
    %v183 = vpack.c.b16 %v171, %v170
    %v184 = vpack.c.b16 %v173, %v172
    %v185 = vpack.c.b16 %v175, %v174
    %v186 = vpack.c.b16 %v177, %v176
    %v187 = vpack.c.b16 %v179, %v178
    %196 = vmatprep.subr.bf16.mxu0 0
    %197 = vmatpush1.bf16.msra.mxu0 %v180
    %198 = vmatprep.subr.bf16.mxu0 0
    %199 = vmatpush1.bf16.msra.mxu0 %v181
    %200 = vmatprep.subr.bf16.mxu0 0
    %201 = vmatpush1.bf16.msra.mxu0 %v182
    %202 = vmatprep.subr.bf16.mxu0 0
    %203 = vmatpush1.bf16.msra.mxu0 %v183
    %204 = vmatprep.subr.bf16.mxu0 0
    %205 = vmatpush1.bf16.msra.mxu0 %v184
    %206 = vmatprep.subr.bf16.mxu0 0
    %207 = vmatpush1.bf16.msra.mxu0 %v185
    %208 = vmatprep.subr.bf16.mxu0 0
    %209 = vmatpush1.bf16.msra.mxu0 %v186
    %210 = vmatprep.subr.bf16.mxu0 0
    %211 = vmatpush1.bf16.msra.mxu0 %v187
    %212 = vmatprep.subr.bf16.mxu0 0
    %213 = vmatpush1.bf16.msra.mxu0 0
    %214 = vmatprep.subr.bf16.mxu0 0
    %215 = vmatpush1.bf16.msra.mxu0 0
    %216 = vmatprep.subr.bf16.mxu0 0
    %217 = vmatpush1.bf16.msra.mxu0 0
    %218 = vmatprep.subr.bf16.mxu0 0
    %219 = vmatpush1.bf16.msra.mxu0 0
    %220 = vmatprep.subr.bf16.mxu0 0
    %221 = vmatpush1.bf16.msra.mxu0 0
    %222 = vmatprep.subr.bf16.mxu0 0
    %223 = vmatpush1.bf16.msra.mxu0 0
    %224 = vmatprep.subr.bf16.mxu0 0
    %225 = vmatpush1.bf16.msra.mxu0 0
    %226 = vmatprep.subr.bf16.mxu0 0
    %227 = vmatpush1.bf16.msra.mxu0 0
    %228 = vmatprep.mubr.bf16.mxu0 0
    %229 = vmatmul.mubr.bf16.gmra.mrb[0].mxu0 %v124
    %v230 = vpop.f32.mrb[0].mxu0
    %v231 = vadd.f32 %v146, %v230
    %v232 = vpop.f32.mrb[0].mxu0
    %v233 = vpop.f32.mrb[0].mxu0
    %v234 = vadd.f32 %v146, %v233
    %v235 = vpop.f32.mrb[0].mxu0
    %236 = vdwg.mxu0
    %v237 = vmax.f32 %v231, 0.0
    %v238 = vmax.f32 %v234, 0.0
    %v239 = vpack.c.bf16 %v238, %v237
    %v240 = vld [vmem:[#allocation4] sm:$0xf]
    %v241 = vld [vmem:[#allocation4 + $0x4] sm:$0xf]
    %v242 = vld [vmem:[#allocation4 + $0x8] sm:$0xf]
    %v243 = vld [vmem:[#allocation4 + $0xc] sm:$0xf]
    %v244 = vld [vmem:[#allocation4 + $0x10] sm:$0xf]
    %v245 = vld [vmem:[#allocation4 + $0x14] sm:$0xf]
    %v246 = vld [vmem:[#allocation4 + $0x18] sm:$0xf]
    %v247 = vld [vmem:[#allocation4 + $0x1c] sm:$0xf]
    %v248 = vld [vmem:[#allocation4 + $0x20] sm:$0xf]
    %v249 = vld [vmem:[#allocation4 + $0x24] sm:$0xf]
    %v250 = vld [vmem:[#allocation4 + $0x28] sm:$0xf]
    %v251 = vld [vmem:[#allocation4 + $0x2c] sm:$0xf]
    %v252 = vld [vmem:[#allocation4 + $0x30] sm:$0xf]
    %v253 = vld [vmem:[#allocation4 + $0x34] sm:$0xf]
    %v254 = vld [vmem:[#allocation4 + $0x38] sm:$0xf]
    %v255 = vld [vmem:[#allocation4 + $0x3c] sm:$0xf]
    %v256 = vld [vmem:[%s6] sm:$0x1]
    %v258 = vlaneseq
    %v259 = vshrl.u32 %v258, 7
    %v260 = vsub.s32 0, %v259
    %v261 = vrot.slane %v256, %v260
    %v279 = vunpack.c.l.b16 %v240
    %v280 = vunpack.c.l.b16 %v241
    %v281 = vunpack.c.l.b16 %v242
    %v282 = vunpack.c.l.b16 %v243
    %v283 = vunpack.c.l.b16 %v244
    %v284 = vunpack.c.l.b16 %v245
    %v285 = vunpack.c.l.b16 %v246
    %v286 = vunpack.c.l.b16 %v247
    %v287 = vunpack.c.l.b16 %v248
    %v288 = vunpack.c.l.b16 %v249
    %v289 = vunpack.c.l.b16 %v250
    %v290 = vunpack.c.l.b16 %v251
    %v291 = vunpack.c.l.b16 %v252
    %v292 = vunpack.c.l.b16 %v253
    %v293 = vunpack.c.l.b16 %v254
    %v294 = vunpack.c.l.b16 %v255
    %v295 = vpack.c.b16 %v280, %v279
    %v296 = vpack.c.b16 %v282, %v281
    %v297 = vpack.c.b16 %v284, %v283
    %v298 = vpack.c.b16 %v286, %v285
    %v299 = vpack.c.b16 %v288, %v287
    %v300 = vpack.c.b16 %v290, %v289
    %v301 = vpack.c.b16 %v292, %v291
    %v302 = vpack.c.b16 %v294, %v293
    %311 = vmatprep.subr.bf16.mxu0 0
    %312 = vmatpush1.bf16.msra.mxu0 %v295
    %313 = vmatprep.subr.bf16.mxu0 0
    %314 = vmatpush1.bf16.msra.mxu0 %v296
    %315 = vmatprep.subr.bf16.mxu0 0
    %316 = vmatpush1.bf16.msra.mxu0 %v297
    %317 = vmatprep.subr.bf16.mxu0 0
    %318 = vmatpush1.bf16.msra.mxu0 %v298
    %319 = vmatprep.subr.bf16.mxu0 0
    %320 = vmatpush1.bf16.msra.mxu0 %v299
    %321 = vmatprep.subr.bf16.mxu0 0
    %322 = vmatpush1.bf16.msra.mxu0 %v300
    %323 = vmatprep.subr.bf16.mxu0 0
    %324 = vmatpush1.bf16.msra.mxu0 %v301
    %325 = vmatprep.subr.bf16.mxu0 0
    %326 = vmatpush1.bf16.msra.mxu0 %v302
    %327 = vmatprep.subr.bf16.mxu0 0
    %328 = vmatpush1.bf16.msra.mxu0 0
    %329 = vmatprep.subr.bf16.mxu0 0
    %330 = vmatpush1.bf16.msra.mxu0 0
    %331 = vmatprep.subr.bf16.mxu0 0
    %332 = vmatpush1.bf16.msra.mxu0 0
    %333 = vmatprep.subr.bf16.mxu0 0
    %334 = vmatpush1.bf16.msra.mxu0 0
    %335 = vmatprep.subr.bf16.mxu0 0
    %336 = vmatpush1.bf16.msra.mxu0 0
    %337 = vmatprep.subr.bf16.mxu0 0
    %338 = vmatpush1.bf16.msra.mxu0 0
    %339 = vmatprep.subr.bf16.mxu0 0
    %340 = vmatpush1.bf16.msra.mxu0 0
    %341 = vmatprep.subr.bf16.mxu0 0
    %342 = vmatpush1.bf16.msra.mxu0 0
    %343 = vmatprep.mubr.bf16.mxu0 0
    %344 = vmatmul.mubr.bf16.gmra.mrb[0].mxu0 %v239
    %v345 = vpop.f32.mrb[0].mxu0
    %v346 = vadd.f32 %v261, %v345
    %v347 = vpop.f32.mrb[0].mxu0
    %v348 = vpop.f32.mrb[0].mxu0
    %v349 = vadd.f32 %v261, %v348
    %v350 = vpop.f32.mrb[0].mxu0
    %351 = vdwg.mxu0
    %352 = vmax.xlane.f32.xlu0 %v346
    %v353 = vpop.xlane.xlu0 %352
    %354 = vmax.xlane.f32.xlu0 %v349
    %v355 = vpop.xlane.xlu0 %354
    %v356 = vsub.f32 %v346, %v353
    %v357 = vsub.f32 %v349, %v355
    %v358 = vmul.f32 %v356, 1.442695
    %v359 = vpow.pop %v358
    %v360 = vmul.f32 %v357, 1.442695
    %v361 = vpow.pop %v360
    %362 = vadd.xlane.f32.xlu0 %v359
    %v363 = vpop.xlane.xlu0 %362
    %364 = vadd.xlane.f32.xlu0 %v361
    %v365 = vpop.xlane.xlu0 %364
    %v366 = vrcp.pop %v363
    %v367 = vmul.f32 %v359, %v366
    %v368 = vrcp.pop %v365
    %v369 = vmul.f32 %v361, %v368
    %370 = vst [vmem:[%s7] sm:$0xff] %v367
    %371 = vst [vmem:[%s7 + $0x8] sm:$0xff] %v369
    // Predicated region
    $region38: #{pt_deep_forward.1} parent=1 // pred_check
      _
    $region39: #{pt_deep_forward.1} parent=1 // pred_check_branch
      %373 = sbr.rel (0) target = $region41
    $region40: #{pt_deep_forward.1} parent=1 // pred_region
      _
    $region41: #{pt_deep_forward.1} parent=1 // pred_fallthru
      _
    // Predicated region
    $region42: #{pt_deep_forward.1} parent=1 // pred_check
      _
    $region43: #{pt_deep_forward.1} parent=1 // pred_check_branch
      %375 = sbr.rel (0) target = $region45
    $region44: #{pt_deep_forward.1} parent=1 // pred_region
      _
    $region45: #{pt_deep_forward.1} parent=1 // pred_fallthru
      _
    %376 = vsyncpa [#allocation3], 1
    %377 = vsyncpa [#allocation5], 1

</llo_original>
